<compile_context>
chip_gen: v6e
topology: v6e:2x2x1
jax: 0.10.0
libtpu: 0.0.40
codegen_flags: <defaults>
</compile_context>

<pallas_src>
import jax
import jax.numpy as jnp
import numpy as np
from jax import lax
from jax.experimental import pallas as pl
from jax.experimental.pallas import tpu as pltpu


def ea_kernel(xpad_ref, m_ref, b_ref, out_ref):
    """One batch element per grid step; everything lane-dense (last dim = W*C)."""
    Hp2, WC = xpad_ref.shape[1], xpad_ref.shape[2]
    H = Hp2 - 2

    xp = xpad_ref[0]                      # (H+2, W*C) f32, H-padded slab
    xc = xp[1:1 + H, :]                   # center rows == original x

    # conv3x3 as 3 dense matmuls: row-shifted slab @ block-banded weight.
    acc = b_ref[...]                      # (1, W*C) -> broadcasts over H rows
    acc = acc + jnp.dot(xp[0:H, :], m_ref[0],
                        preferred_element_type=jnp.float32)
    acc = acc + jnp.dot(xc, m_ref[1],
                        preferred_element_type=jnp.float32)
    acc = acc + jnp.dot(xp[2:2 + H, :], m_ref[2],
                        preferred_element_type=jnp.float32)

    # element-wise attention: x * sigmoid(conv(x)); single dense store.
    out_ref[0] = (xc * jax.nn.sigmoid(acc)).astype(out_ref.dtype)


def _build_banded_weight(w_hwio, W):
    """Fold the 3 W-direction taps + channel mixing into M[dy]: (W*Cin, W*Cout).

    M[dy, s*Cin + ci, w*Cout + co] = w_hwio[dy, dx, ci, co] where s = w + dx - 1
    (entries with s outside [0, W) are dropped -> zero padding in W is baked in).
    """
    K, _, Cin, Cout = w_hwio.shape
    dxs = jnp.arange(K)
    w_out = jnp.arange(W)
    src = jnp.arange(W)
    # mask[dx, s, w] = 1 iff s == w + dx - K//2
    mask = (src[None, :, None]
            == (w_out[None, None, :] + dxs[:, None, None] - (K // 2))
            ).astype(jnp.float32)                                   # (K, W, W)
    m = jnp.einsum("xsw,yxio->ysiwo", mask, w_hwio.astype(jnp.float32))
    return m.reshape(K, W * Cin, W * Cout)                          # (K, W*Cin, W*Cout)


def ea_pallas(x, weight, bias):
    """x: (N, C, H, W) NCHW; weight: (Cout, Cin, 3, 3) OIHW; bias: (Cout,)."""
    N, C, H, W = x.shape
    Cout = weight.shape[0]
    WC_in = W * C
    WC_out = W * Cout

    # Layout plumbing in the wrapper (cheap XLA reshapes/transposes/pads):
    # NCHW -> lane-dense (N, H, W*C), zero-padded by 1 row on each H side.
    x_flat = jnp.transpose(x, (0, 2, 3, 1)).reshape(N, H, WC_in).astype(jnp.float32)
    x_pad = jnp.pad(x_flat, ((0, 0), (1, 1), (0, 0)))               # (N, H+2, W*C)
    w_hwio = jnp.transpose(weight, (2, 3, 1, 0))                    # (3, 3, Cin, Cout)
    m = _build_banded_weight(w_hwio, W)                             # (3, W*Cin, W*Cout)
    b_flat = jnp.tile(bias.astype(jnp.float32), W).reshape(1, WC_out)

    out_flat = pl.pallas_call(
        ea_kernel,
        out_shape=jax.ShapeDtypeStruct((N, H, WC_out), x.dtype),
        grid_spec=pltpu.PrefetchScalarGridSpec(
            num_scalar_prefetch=0,
            grid=(N,),
            in_specs=[
                pl.BlockSpec((1, H + 2, WC_in), lambda n: (n, 0, 0)),
                pl.BlockSpec((3, WC_in, WC_out), lambda n: (0, 0, 0)),
                pl.BlockSpec((1, WC_out), lambda n: (0, 0)),
            ],
            out_specs=pl.BlockSpec((1, H, WC_out), lambda n: (n, 0, 0)),
        ),
        compiler_params=pltpu.CompilerParams(
            dimension_semantics=("parallel",)),                     # shard batch on v7x
    )(x_pad, m, b_flat)

    return jnp.transpose(out_flat.reshape(N, H, W, Cout), (0, 3, 1, 2))


def ea_ref(x, weight, bias):
    """Pure-JAX reference with PyTorch (NCHW/OIHW) conv semantics."""
    y = lax.conv_general_dilated(
        x, weight, (1, 1), [(1, 1), (1, 1)],
        dimension_numbers=("NCHW", "OIHW", "NCHW"))
    y = y + bias[None, :, None, None]
    return x * jax.nn.sigmoid(y)


if __name__ == "__main__":
    N, dim, H, W = 2, 16, 16, 16

    key = jax.random.PRNGKey(0)
    kx, kw, kb = jax.random.split(key, 3)
    x = jax.random.normal(kx, (N, dim, H, W), jnp.float32)                  # NCHW
    weight = jax.random.normal(kw, (dim, dim, 3, 3), jnp.float32) * 0.02    # OIHW
    bias = jax.random.normal(kb, (dim,), jnp.float32) * 0.01

    out = jax.block_until_ready(ea_pallas(x, weight, bias))
    ref = jax.block_until_ready(ea_ref(x, weight, bias))

    assert out.shape == ref.shape and out.dtype == ref.dtype
    np.testing.assert_allclose(np.asarray(out), np.asarray(ref),
                               atol=2e-4, rtol=2e-4)

    print("KERNEL_OK")
</pallas_src>

<mosaic_0001>
module attributes {stable_mosaic.version = 11 : i64} {
  func.func @ea_kernel(%arg0: i32, %arg1: memref<1x18x256xf32, #tpu.memory_space<vmem>>, %arg2: memref<3x256x256xf32, #tpu.memory_space<vmem>>, %arg3: memref<1x256xf32, #tpu.memory_space<vmem>>, %arg4: memref<1x16x256xf32, #tpu.memory_space<vmem>>) attributes {dimension_semantics = [#tpu.dimension_semantics<parallel>], iteration_bounds = array<i64: 2>, scalar_prefetch = 0 : i64, scratch_operands = 0 : i64, tpu.core_type = #tpu.core_type<tc>, window_params = [{transform_indices = @transform_0, window_bounds = array<i64: 1, 18, 256>}, {pipeline_mode = #tpu.pipeline_mode<synchronous>, transform_indices = @transform_1, window_bounds = array<i64: 3, 256, 256>}, {pipeline_mode = #tpu.pipeline_mode<synchronous>, transform_indices = @transform_2, window_bounds = array<i64: 1, 256>}, {transform_indices = @transform_3, window_bounds = array<i64: 1, 16, 256>}]} {
    %c0 = arith.constant 0 : index
    %c0_0 = arith.constant 0 : index
    %c0_1 = arith.constant 0 : index
    %0 = vector.load %arg1[%c0, %c0_0, %c0_1] : memref<1x18x256xf32, #tpu.memory_space<vmem>>, vector<1x18x256xf32>
    %1 = vector.shape_cast %0 : vector<1x18x256xf32> to vector<18x256xf32>
    %2 = vector.extract_strided_slice %1 {offsets = [1, 0], sizes = [16, 256], strides = [1, 1]} : vector<18x256xf32> to vector<16x256xf32>
    %c0_2 = arith.constant 0 : index
    %c0_3 = arith.constant 0 : index
    %3 = vector.load %arg3[%c0_2, %c0_3] : memref<1x256xf32, #tpu.memory_space<vmem>>, vector<1x256xf32>
    %4 = vector.extract_strided_slice %1 {offsets = [0, 0], sizes = [16, 256], strides = [1, 1]} : vector<18x256xf32> to vector<16x256xf32>
    %c0_4 = arith.constant 0 : index
    %c0_5 = arith.constant 0 : index
    %c0_6 = arith.constant 0 : index
    %5 = vector.load %arg2[%c0_4, %c0_5, %c0_6] : memref<3x256x256xf32, #tpu.memory_space<vmem>>, vector<1x256x256xf32>
    %6 = vector.shape_cast %5 : vector<1x256x256xf32> to vector<256x256xf32>
    %cst = arith.constant dense<0.000000e+00> : vector<16x256xf32>
    %7 = tpu.matmul %4, %6, %cst {dimension_numbers = #tpu.dot_dimension_numbers<[1], [0], [0], [1], [0, 0, 1, 1], [], []>} : vector<16x256xf32>, vector<256x256xf32>, vector<16x256xf32> -> vector<16x256xf32>
    %8 = vector.broadcast %3 : vector<1x256xf32> to vector<16x256xf32>
    %9 = arith.addf %8, %7 : vector<16x256xf32>
    %c1 = arith.constant 1 : index
    %c0_7 = arith.constant 0 : index
    %c0_8 = arith.constant 0 : index
    %10 = vector.load %arg2[%c1, %c0_7, %c0_8] : memref<3x256x256xf32, #tpu.memory_space<vmem>>, vector<1x256x256xf32>
    %11 = vector.shape_cast %10 : vector<1x256x256xf32> to vector<256x256xf32>
    %cst_9 = arith.constant dense<0.000000e+00> : vector<16x256xf32>
    %12 = tpu.matmul %2, %11, %cst_9 {dimension_numbers = #tpu.dot_dimension_numbers<[1], [0], [0], [1], [0, 0, 1, 1], [], []>} : vector<16x256xf32>, vector<256x256xf32>, vector<16x256xf32> -> vector<16x256xf32>
    %13 = arith.addf %9, %12 : vector<16x256xf32>
    %14 = vector.extract_strided_slice %1 {offsets = [2, 0], sizes = [16, 256], strides = [1, 1]} : vector<18x256xf32> to vector<16x256xf32>
    %c2 = arith.constant 2 : index
    %c0_10 = arith.constant 0 : index
    %c0_11 = arith.constant 0 : index
    %15 = vector.load %arg2[%c2, %c0_10, %c0_11] : memref<3x256x256xf32, #tpu.memory_space<vmem>>, vector<1x256x256xf32>
    %16 = vector.shape_cast %15 : vector<1x256x256xf32> to vector<256x256xf32>
    %cst_12 = arith.constant dense<0.000000e+00> : vector<16x256xf32>
    %17 = tpu.matmul %14, %16, %cst_12 {dimension_numbers = #tpu.dot_dimension_numbers<[1], [0], [0], [1], [0, 0, 1, 1], [], []>} : vector<16x256xf32>, vector<256x256xf32>, vector<16x256xf32> -> vector<16x256xf32>
    %18 = arith.addf %13, %17 : vector<16x256xf32>
    %19 = arith.negf %18 : vector<16x256xf32>
    %20 = math.exp %19 : vector<16x256xf32>
    %cst_13 = arith.constant 1.000000e+00 : f32
    %21 = vector.broadcast %cst_13 : f32 to vector<16x256xf32>
    %22 = arith.addf %21, %20 : vector<16x256xf32>
    %23 = arith.divf %21, %22 : vector<16x256xf32>
    %24 = arith.mulf %2, %23 : vector<16x256xf32>
    %c0_14 = arith.constant 0 : index
    %c0_15 = arith.constant 0 : index
    %c0_16 = arith.constant 0 : index
    %25 = vector.load %arg4[%c0_14, %c0_15, %c0_16] : memref<1x16x256xf32, #tpu.memory_space<vmem>>, vector<1x16x256xf32>
    %26 = vector.shape_cast %25 : vector<1x16x256xf32> to vector<16x256xf32>
    %27 = vector.shape_cast %24 : vector<16x256xf32> to vector<1x16x256xf32>
    tpu.vector_store %arg4[%c0_14, %c0_15, %c0_16], %27 {strides = array<i32>} : memref<1x16x256xf32, #tpu.memory_space<vmem>>, vector<1x16x256xf32>,
    return
  }
  func.func @transform_0(%arg0: i32) -> (i32, i32, i32) {
    %c0_i32 = arith.constant 0 : i32
    %c0_i32_0 = arith.constant 0 : i32
    %c0_i32_1 = arith.constant 0 : i32
    return %arg0, %c0_i32, %c0_i32_0 : i32, i32, i32
  }
  func.func @transform_1(%arg0: i32) -> (i32, i32, i32) {
    %c0_i32 = arith.constant 0 : i32
    %c0_i32_0 = arith.constant 0 : i32
    %c0_i32_1 = arith.constant 0 : i32
    %c0_i32_2 = arith.constant 0 : i32
    return %c0_i32, %c0_i32_0, %c0_i32_1 : i32, i32, i32
  }
  func.func @transform_2(%arg0: i32) -> (i32, i32) {
    %c0_i32 = arith.constant 0 : i32
    %c0_i32_0 = arith.constant 0 : i32
    %c0_i32_1 = arith.constant 0 : i32
    return %c0_i32, %c0_i32_0 : i32, i32
  }
  func.func @transform_3(%arg0: i32) -> (i32, i32, i32) {
    %c0_i32 = arith.constant 0 : i32
    %c0_i32_0 = arith.constant 0 : i32
    %c0_i32_1 = arith.constant 0 : i32
    return %arg0, %c0_i32, %c0_i32_0 : i32, i32, i32
  }
}

</mosaic_0001>

<llo_original>
// kernel: tpu_custom_call.1
$region0: #{tpu_custom_call.1}
  #allocation0 [shape = 'u32[]', space=smem, size = 0x4, offset = 0x4, fixed_abs, tag = 'smem constant byte address 0x4 - core index']
  #allocation1 [shape = 'u32[144,128]{1,0:T(1,128)}', space=vmem, size = 0x12000, scoped, tag = 'internal scratch']
  %s0 = inlined_call_operand.vmem [shape: f32[2,18,256], index: 0, kind: input, shape index: {}]
  %s1 = inlined_call_operand.hbm [shape: f32[3,256,256], index: 1, kind: input, shape index: {}]
  %s2 = inlined_call_operand.vmem [shape: f32[1,256], index: 2, kind: input, shape index: {}]
  %s3 = inlined_call_operand.hbm [shape: f32[2,16,256], index: 3, kind: output, shape index: {}]
  %s4 = sld [smem:[#allocation0]]
  $region49: #{tpu_custom_call.1} parent=0
    _
  %s6 = ssub.s32 1, %s4
  %s7 = scalar_select 0, %s6, %s4
  $region1: #{tpu_custom_call.1} parent=0
    #allocation2 [shape = 'u8[786432]{0}', space=vmem, size = 0xc0000, scoped, tag = 'input window, operand 1, single buffered']
    #allocation3 [shape = 's32[2]{0}', space=sflag, size = 0x8, scoped, tag = 'scoped memory for tpu_custom_call.1']
    #allocation4 [shape = 's32[2]{0}', space=sflag, size = 0x8, scoped, tag = 'scoped memory for tpu_custom_call.1']
    #allocation5 [shape = 'u8[32768]{0}', space=vmem, size = 0x8000, scoped, tag = 'output window, operand 0']
    %8 = vsyncpa [#allocation3], 0
    %9 = vsyncpa [#allocation4], 0
    %s10 = scalar_lea.sflag [#allocation4], 1
    %11 = vsyncpa %s10, 0
    loop: start=0, step=1, limit=4
    $region2: #{tpu_custom_call.1} parent=1 // loop_pre_header
      _
    $region3: #{tpu_custom_call.1} parent=1 // loop_header
      %s13 = sphi 0, %s17
      %p14 = scmp.ge.s32.totalorder %s13, 4
      %s23 = sphi 0, %s25
      %s26 = sphi 0, %s23
      %s27 = sphi 0, %s26
      %s43 = sphi 0, %s27
      %s47 = sphi 0, %s47
      %s49 = sphi 0, %s47
      %s50 = sphi 0, %s49
      %s64 = sphi 0, %s50
      %s68 = sphi 0, %s68
      %s70 = sphi 0, %s68
      %s71 = sphi 0, %s70
      %s85 = sphi 0, %s71
      %s91 = sphi 0, %s93
      %s94 = sphi 0, %s91
      %s95 = sphi 0, %s94
      %s111 = sphi 0, %s95
    $region4: #{tpu_custom_call.1} parent=1 // loop_header_branch
      %16 = sbr.rel (%p14) target = $region8
    $region5: #{tpu_custom_call.1} parent=1 // loop_body
      %s18 = ssub.s32 %s13, 1
      %s19 = ssub.s32 %s13, 2
      %s20 = sadd.s32 %s13, 1
      %s21 = ssub.s32 %s13, %s20
      %p22 = scmp.eq.s32.totalorder %s21, 0
      %s24 = sadd.s32 %s23, 1
      %s25 = scalar_select %p22, %s23, %s24
      %p28 = pneg %p22
      %p29 = scmp.eq.s32.totalorder %s13, 1
      %p30 = por %p28, %p29
      %p31 = scmp.ne.s32.totalorder %s23, %s26
      %p32 = scmp.eq.s32.totalorder %s13, 0
      %p33 = por %p31, %p32
      %p34 = scmp.ne.s32.totalorder %s23, %s26
      %p35 = scmp.eq.s32.totalorder %s18, 1
      %p36 = por %p34, %p35
      %p37 = scmp.ne.s32.totalorder %s26, %s27
      %p38 = scmp.eq.s32.totalorder %s18, 0
      %p39 = por %p37, %p38
      %p40 = scmp.ne.s32.totalorder %s26, %s27
      %p41 = scmp.eq.s32.totalorder %s19, 1
      %p42 = por %p40, %p41
      %p44 = scmp.ne.s32.totalorder %s27, %s43
      %p45 = scmp.eq.s32.totalorder %s19, 0
      %p46 = por %p44, %p45
      %s48 = sadd.s32 %s47, 1
      %p51 = scmp.eq.s32.totalorder %s13, 1
      %p52 = scmp.ne.s32.totalorder %s47, %s49
      %p53 = scmp.eq.s32.totalorder %s13, 0
      %p54 = por %p52, %p53
      %p55 = scmp.ne.s32.totalorder %s47, %s49
      %p56 = scmp.eq.s32.totalorder %s18, 1
      %p57 = por %p55, %p56
      %p58 = scmp.ne.s32.totalorder %s49, %s50
      %p59 = scmp.eq.s32.totalorder %s18, 0
      %p60 = por %p58, %p59
      %p61 = scmp.ne.s32.totalorder %s49, %s50
      %p62 = scmp.eq.s32.totalorder %s19, 1
      %p63 = por %p61, %p62
      %p65 = scmp.ne.s32.totalorder %s50, %s64
      %p66 = scmp.eq.s32.totalorder %s19, 0
      %p67 = por %p65, %p66
      %s69 = sadd.s32 %s68, 1
      %p72 = scmp.eq.s32.totalorder %s13, 1
      %p73 = scmp.ne.s32.totalorder %s68, %s70
      %p74 = scmp.eq.s32.totalorder %s13, 0
      %p75 = por %p73, %p74
      %p76 = scmp.ne.s32.totalorder %s68, %s70
      %p77 = scmp.eq.s32.totalorder %s18, 1
      %p78 = por %p76, %p77
      %p79 = scmp.ne.s32.totalorder %s70, %s71
      %p80 = scmp.eq.s32.totalorder %s18, 0
      %p81 = por %p79, %p80
      %p82 = scmp.ne.s32.totalorder %s70, %s71
      %p83 = scmp.eq.s32.totalorder %s19, 1
      %p84 = por %p82, %p83
      %p86 = scmp.ne.s32.totalorder %s71, %s85
      %p87 = scmp.eq.s32.totalorder %s19, 0
      %p88 = por %p86, %p87
      %s89 = ssub.s32 %s13, %s20
      %p90 = scmp.eq.s32.totalorder %s89, 0
      %s92 = sadd.s32 %s91, 1
      %s93 = scalar_select %p90, %s91, %s92
      %p96 = pneg %p90
      %p97 = scmp.eq.s32.totalorder %s13, 1
      %p98 = por %p96, %p97
      %p99 = scmp.ne.s32.totalorder %s91, %s94
      %p100 = scmp.eq.s32.totalorder %s13, 0
      %p101 = por %p99, %p100
      %p102 = scmp.ne.s32.totalorder %s91, %s94
      %p103 = scmp.eq.s32.totalorder %s18, 1
      %p104 = por %p102, %p103
      %p105 = scmp.ne.s32.totalorder %s94, %s95
      %p106 = scmp.eq.s32.totalorder %s18, 0
      %p107 = por %p105, %p106
      %p108 = scmp.ne.s32.totalorder %s94, %s95
      %p109 = scmp.eq.s32.totalorder %s19, 1
      %p110 = por %p108, %p109
      %p112 = scmp.ne.s32.totalorder %s95, %s111
      %p113 = scmp.eq.s32.totalorder %s19, 0
      %p114 = por %p112, %p113
      %p115 = scmp.le.s32.totalorder 1, %s13
      %p116 = scmp.lt.s32.totalorder %s13, 3
      %p117 = pnand %p115, %p116
      %p118 = pneg %p117
      // Predicated region
      $region9: #{tpu_custom_call.1} parent=5 // pred_check
        _
      $region10: #{tpu_custom_call.1} parent=5 // pred_check_branch
        %120 = sbr.rel (%p117) target = $region12
      $region11: #{tpu_custom_call.1} parent=5 // pred_region
        %s121 = ssub.s32 %s13, 1
        // Predicated region
        $region13: #{tpu_custom_call.1} parent=11 // pred_check
          %p122 = pneg %p60
        $region14: #{tpu_custom_call.1} parent=11 // pred_check_branch
          %124 = sbr.rel (%p122) target = $region16
        $region15: #{tpu_custom_call.1} parent=11 // pred_region
          %s126 = ssub.s32 24576, 24576
          %127 = vsyncadd [#allocation3], %s126
          %s128 = sshll.u32 [#allocation2], 4
          %s129 = int_to_ptr.vmem [resolvable:$true] %s128
          %134 = dma.hbm_to_vmem [thread:$0]  %s1, 24576, %s129, [#allocation3], 256, 256, 16
        $region16: #{tpu_custom_call.1} parent=11 // pred_fallthru
          _
        // Predicated region
        $region17: #{tpu_custom_call.1} parent=11 // pred_check
          %p135 = pneg %p81
        $region18: #{tpu_custom_call.1} parent=11 // pred_check_branch
          %137 = sbr.rel (%p135) target = $region20
        $region19: #{tpu_custom_call.1} parent=11 // pred_region
          _
        $region20: #{tpu_custom_call.1} parent=11 // pred_fallthru
          _
      $region12: #{tpu_custom_call.1} parent=5 // pred_fallthru
        _
      %p138 = scmp.lt.s32.totalorder %s13, 2
      // Predicated region
      $region21: #{tpu_custom_call.1} parent=5 // pred_check
        %p139 = pneg %p138
      $region22: #{tpu_custom_call.1} parent=5 // pred_check_branch
        %141 = sbr.rel (%p139) target = $region24
      $region23: #{tpu_custom_call.1} parent=5 // pred_region
        // Predicated region
        $region25: #{tpu_custom_call.1} parent=23 // pred_check
          %p142 = pneg %p33
        $region26: #{tpu_custom_call.1} parent=23 // pred_check_branch
          %144 = sbr.rel (%p142) target = $region28
        $region27: #{tpu_custom_call.1} parent=23 // pred_region
          %p145 = scmp.lt.s32.totalorder %s13, 1
          %s146 = scalar_select %p145, %s13, 1
          %s147 = smul.addr %s146, 6
          %s148 = smul.addr %s147, 8
          %s149 = scalar_lea.vmem %s0, %s148
        $region28: #{tpu_custom_call.1} parent=23 // pred_fallthru
          _
      $region24: #{tpu_custom_call.1} parent=5 // pred_fallthru
        _
      %p150 = scmp.le.s32.totalorder 1, %s13
      %p151 = scmp.lt.s32.totalorder %s13, 3
      %p152 = pnand %p150, %p151
      %p153 = pneg %p152
      // Predicated region
      $region29: #{tpu_custom_call.1} parent=5 // pred_check
        _
      $region30: #{tpu_custom_call.1} parent=5 // pred_check_branch
        %155 = sbr.rel (%p152) target = $region32
      $region31: #{tpu_custom_call.1} parent=5 // pred_region
        %s156 = ssub.s32 %s13, 1
        // Predicated region
        $region33: #{tpu_custom_call.1} parent=31 // pred_check
          %p157 = pneg %p60
        $region34: #{tpu_custom_call.1} parent=31 // pred_check_branch
          %159 = sbr.rel (%p157) target = $region36
        $region35: #{tpu_custom_call.1} parent=31 // pred_region
          %160 = dma.done [#allocation3], 24576
        $region36: #{tpu_custom_call.1} parent=31 // pred_fallthru
          _
        %p161 = scmp.lt.s32.totalorder %s18, 1
        %s162 = scalar_select %p161, %s18, 1
        %s163 = smul.addr %s162, 6
        %s164 = smul.addr %s163, 8
        %s165 = scalar_lea.vmem %s0, %s164
        %p166 = pneg %p39
        %p167 = pneg %p36
        %p168 = pneg %p60
        %p169 = pneg %p57
        %p170 = pneg %p81
        %p171 = pneg %p78
        %p172 = pneg %p107
        %p173 = pneg %p104
        %s174 = sand.u32 %s94, 1
        %s175 = scalar_lea.sflag [#allocation4], %s174
        %s176 = sand.u32 %s94, 1
        %s177 = smul.addr %s176, 32
        %s178 = scalar_lea.vmem [#allocation5], %s177
        %p179 = scmp.lt.s32.totalorder %s18, 1
        %s180 = scalar_select %p179, %s18, 1
        %s181 = smul.addr %s180, 6
        %s182 = smul.addr %s181, 8
        %s183 = scalar_lea.vmem %s0, %s182
        %v184 = vld [vmem:[%s183] sm:$0xff]
        %v185 = vld [vmem:[%s183 + $0x8] sm:$0xff]
        %v186 = vld [vmem:[%s183 + $0x10] sm:$0xff]
        %v187 = vld [vmem:[%s183 + $0x18] sm:$0xff]
        %v188 = vld [vmem:[%s183 + $0x20] sm:$0x3]
        %v189 = vld [vmem:[%s183 + $0x28] sm:$0x3]
        %v190 = vld [vmem:[%s2] sm:$0x3]
        %v191 = vld [vmem:[#allocation2] sm:$0xff]
        %v192 = vld [vmem:[#allocation2 + $0x8] sm:$0xff]
        %v193 = vld [vmem:[#allocation2 + $0x10] sm:$0xff]
        %v194 = vld [vmem:[#allocation2 + $0x18] sm:$0xff]
        %v195 = vld [vmem:[#allocation2 + $0x20] sm:$0xff]
        %v196 = vld [vmem:[#allocation2 + $0x28] sm:$0xff]
        %v197 = vld [vmem:[#allocation2 + $0x30] sm:$0xff]
        %v198 = vld [vmem:[#allocation2 + $0x38] sm:$0xff]
        %v199 = vld [vmem:[#allocation2 + $0x40] sm:$0xff]
        %v200 = vld [vmem:[#allocation2 + $0x48] sm:$0xff]
        %v201 = vld [vmem:[#allocation2 + $0x50] sm:$0xff]
        %v202 = vld [vmem:[#allocation2 + $0x58] sm:$0xff]
        %v203 = vld [vmem:[#allocation2 + $0x60] sm:$0xff]
        %v204 = vld [vmem:[#allocation2 + $0x68] sm:$0xff]
        %v205 = vld [vmem:[#allocation2 + $0x70] sm:$0xff]
        %v206 = vld [vmem:[#allocation2 + $0x78] sm:$0xff]
        %v207 = vld [vmem:[#allocation2 + $0x80] sm:$0xff]
        %v208 = vld [vmem:[#allocation2 + $0x88] sm:$0xff]
        %v209 = vld [vmem:[#allocation2 + $0x90] sm:$0xff]
        %v210 = vld [vmem:[#allocation2 + $0x98] sm:$0xff]
        %v211 = vld [vmem:[#allocation2 + $0xa0] sm:$0xff]
        %v212 = vld [vmem:[#allocation2 + $0xa8] sm:$0xff]
        %v213 = vld [vmem:[#allocation2 + $0xb0] sm:$0xff]
        %v214 = vld [vmem:[#allocation2 + $0xb8] sm:$0xff]
        %v215 = vld [vmem:[#allocation2 + $0xc0] sm:$0xff]
        %v216 = vld [vmem:[#allocation2 + $0xc8] sm:$0xff]
        %v217 = vld [vmem:[#allocation2 + $0xd0] sm:$0xff]
        %v218 = vld [vmem:[#allocation2 + $0xd8] sm:$0xff]
        %v219 = vld [vmem:[#allocation2 + $0xe0] sm:$0xff]
        %v220 = vld [vmem:[#allocation2 + $0xe8] sm:$0xff]
        %v221 = vld [vmem:[#allocation2 + $0xf0] sm:$0xff]
        %v222 = vld [vmem:[#allocation2 + $0xf8] sm:$0xff]
        %v223 = vld [vmem:[#allocation2 + $0x100] sm:$0xff]
        %v224 = vld [vmem:[#allocation2 + $0x108] sm:$0xff]
        %v225 = vld [vmem:[#allocation2 + $0x110] sm:$0xff]
        %v226 = vld [vmem:[#allocation2 + $0x118] sm:$0xff]
        %v227 = vld [vmem:[#allocation2 + $0x120] sm:$0xff]
        %v228 = vld [vmem:[#allocation2 + $0x128] sm:$0xff]
        %v229 = vld [vmem:[#allocation2 + $0x130] sm:$0xff]
        %v230 = vld [vmem:[#allocation2 + $0x138] sm:$0xff]
        %v231 = vld [vmem:[#allocation2 + $0x140] sm:$0xff]
        %v232 = vld [vmem:[#allocation2 + $0x148] sm:$0xff]
        %v233 = vld [vmem:[#allocation2 + $0x150] sm:$0xff]
        %v234 = vld [vmem:[#allocation2 + $0x158] sm:$0xff]
        %v235 = vld [vmem:[#allocation2 + $0x160] sm:$0xff]
        %v236 = vld [vmem:[#allocation2 + $0x168] sm:$0xff]
        %v237 = vld [vmem:[#allocation2 + $0x170] sm:$0xff]
        %v238 = vld [vmem:[#allocation2 + $0x178] sm:$0xff]
        %v239 = vld [vmem:[#allocation2 + $0x180] sm:$0xff]
        %v240 = vld [vmem:[#allocation2 + $0x188] sm:$0xff]
        %v241 = vld [vmem:[#allocation2 + $0x190] sm:$0xff]
        %v242 = vld [vmem:[#allocation2 + $0x198] sm:$0xff]
        %v243 = vld [vmem:[#allocation2 + $0x1a0] sm:$0xff]
        %v244 = vld [vmem:[#allocation2 + $0x1a8] sm:$0xff]
        %v245 = vld [vmem:[#allocation2 + $0x1b0] sm:$0xff]
        %v246 = vld [vmem:[#allocation2 + $0x1b8] sm:$0xff]
        %v247 = vld [vmem:[#allocation2 + $0x1c0] sm:$0xff]
        %v248 = vld [vmem:[#allocation2 + $0x1c8] sm:$0xff]
        %v249 = vld [vmem:[#allocation2 + $0x1d0] sm:$0xff]
        %v250 = vld [vmem:[#allocation2 + $0x1d8] sm:$0xff]
        %v251 = vld [vmem:[#allocation2 + $0x1e0] sm:$0xff]
        %v252 = vld [vmem:[#allocation2 + $0x1e8] sm:$0xff]
        %v253 = vld [vmem:[#allocation2 + $0x1f0] sm:$0xff]
        %v254 = vld [vmem:[#allocation2 + $0x1f8] sm:$0xff]
        %255 = vmatprep.subr.mxu0 %v222
        %256 = vmatpush1.msra.mxu0 %v221
        %257 = vmatprep.subr.mxu0 %v220
        %258 = vmatpush1.msra.mxu0 %v219
        %259 = vmatprep.subr.mxu0 %v218
        %260 = vmatpush1.msra.mxu0 %v217
        %261 = vmatprep.subr.mxu0 %v216
        %262 = vmatpush1.msra.mxu0 %v215
        %263 = vmatprep.subr.mxu0 %v214
        %264 = vmatpush1.msra.mxu0 %v213
        %265 = vmatprep.subr.mxu0 %v212
        %266 = vmatpush1.msra.mxu0 %v211
        %267 = vmatprep.subr.mxu0 %v210
        %268 = vmatpush1.msra.mxu0 %v209
        %269 = vmatprep.subr.mxu0 %v208
        %270 = vmatpush1.msra.mxu0 %v207
        %271 = vmatprep.subr.mxu0 %v206
        %272 = vmatpush1.msra.mxu0 %v205
        %273 = vmatprep.subr.mxu0 %v204
        %274 = vmatpush1.msra.mxu0 %v203
        %275 = vmatprep.subr.mxu0 %v202
        %276 = vmatpush1.msra.mxu0 %v201
        %277 = vmatprep.subr.mxu0 %v200
        %278 = vmatpush1.msra.mxu0 %v199
        %279 = vmatprep.subr.mxu0 %v198
        %280 = vmatpush1.msra.mxu0 %v197
        %281 = vmatprep.subr.mxu0 %v196
        %282 = vmatpush1.msra.mxu0 %v195
        %283 = vmatprep.subr.mxu0 %v194
        %284 = vmatpush1.msra.mxu0 %v193
        %285 = vmatprep.subr.mxu0 %v192
        %286 = vmatpush1.msra.mxu0 %v191
        %287 = vmatprep.subr.mxu0 %v254
        %288 = vmatpush2.msra.mxu0 %v253
        %289 = vmatprep.subr.mxu0 %v252
        %290 = vmatpush2.msra.mxu0 %v251
        %291 = vmatprep.subr.mxu0 %v250
        %292 = vmatpush2.msra.mxu0 %v249
        %293 = vmatprep.subr.mxu0 %v248
        %294 = vmatpush2.msra.mxu0 %v247
        %295 = vmatprep.subr.mxu0 %v246
        %296 = vmatpush2.msra.mxu0 %v245
        %297 = vmatprep.subr.mxu0 %v244
        %298 = vmatpush2.msra.mxu0 %v243
        %299 = vmatprep.subr.mxu0 %v242
        %300 = vmatpush2.msra.mxu0 %v241
        %301 = vmatprep.subr.mxu0 %v240
        %302 = vmatpush2.msra.mxu0 %v239
        %303 = vmatprep.subr.mxu0 %v238
        %304 = vmatpush2.msra.mxu0 %v237
        %305 = vmatprep.subr.mxu0 %v236
        %306 = vmatpush2.msra.mxu0 %v235
        %307 = vmatprep.subr.mxu0 %v234
        %308 = vmatpush2.msra.mxu0 %v233
        %309 = vmatprep.subr.mxu0 %v232
        %310 = vmatpush2.msra.mxu0 %v231
        %311 = vmatprep.subr.mxu0 %v230
        %312 = vmatpush2.msra.mxu0 %v229
        %313 = vmatprep.subr.mxu0 %v228
        %314 = vmatpush2.msra.mxu0 %v227
        %315 = vmatprep.subr.mxu0 %v226
        %316 = vmatpush2.msra.mxu0 %v225
        %317 = vmatprep.subr.mxu0 %v224
        %318 = vmatpush2.msra.mxu0 %v223
        %319 = vmatprep.mubr.f32.mxu0 %v185
        %320 = vmatmul.mubr.f32.gmra.mxu0 %v184
        %v321 = vpop.f32.mrf.mxu0
        %v322 = vadd.f32 0.0, %v321
        %v323 = vpop.f32.mrf.mxu0
        %v324 = vadd.f32 0.0, %v323
        %325 = vmatprep.mubr.f32.mxu0 %v187
        %326 = vmatmul.mubr.f32.gmra.mxu0 %v186
        %v327 = vpop.f32.mrf.mxu0
        %v328 = vadd.f32 0.0, %v327
        %v329 = vpop.f32.mrf.mxu0
        %v330 = vadd.f32 0.0, %v329
        %331 = vdwg.mxu0
        %v333 = vlaneseq
        %v334 = vshrl.u32 %v333, 7
        %v335 = vsub.s32 0, %v334
        %v336 = vrot.slane %v190, %v335
        %v337 = vlaneseq
        %v338 = vshrl.u32 %v337, 7
        %v339 = vsub.s32 1, %v338
        %v340 = vrot.slane %v190, %v339
        %v343 = vadd.f32 %v336, %v322
        %v344 = vadd.f32 %v340, %v324
        %v345 = vadd.f32 %v336, %v328
        %v346 = vadd.f32 %v340, %v330
        %s347 = scalar_lea.vmem [#allocation2], 512
        %v348 = vld [vmem:[%s347] sm:$0xff]
        %v349 = vld [vmem:[%s347 + $0x8] sm:$0xff]
        %v350 = vld [vmem:[%s347 + $0x10] sm:$0xff]
        %v351 = vld [vmem:[%s347 + $0x18] sm:$0xff]
        %v352 = vld [vmem:[%s347 + $0x20] sm:$0xff]
        %v353 = vld [vmem:[%s347 + $0x28] sm:$0xff]
        %v354 = vld [vmem:[%s347 + $0x30] sm:$0xff]
        %v355 = vld [vmem:[%s347 + $0x38] sm:$0xff]
        %v356 = vld [vmem:[%s347 + $0x40] sm:$0xff]
        %v357 = vld [vmem:[%s347 + $0x48] sm:$0xff]
        %v358 = vld [vmem:[%s347 + $0x50] sm:$0xff]
        %v359 = vld [vmem:[%s347 + $0x58] sm:$0xff]
        %v360 = vld [vmem:[%s347 + $0x60] sm:$0xff]
        %v361 = vld [vmem:[%s347 + $0x68] sm:$0xff]
        %v362 = vld [vmem:[%s347 + $0x70] sm:$0xff]
        %v363 = vld [vmem:[%s347 + $0x78] sm:$0xff]
        %v364 = vld [vmem:[%s347 + $0x80] sm:$0xff]
        %v365 = vld [vmem:[%s347 + $0x88] sm:$0xff]
        %v366 = vld [vmem:[%s347 + $0x90] sm:$0xff]
        %v367 = vld [vmem:[%s347 + $0x98] sm:$0xff]
        %v368 = vld [vmem:[%s347 + $0xa0] sm:$0xff]
        %v369 = vld [vmem:[%s347 + $0xa8] sm:$0xff]
        %v370 = vld [vmem:[%s347 + $0xb0] sm:$0xff]
        %v371 = vld [vmem:[%s347 + $0xb8] sm:$0xff]
        %v372 = vld [vmem:[%s347 + $0xc0] sm:$0xff]
        %v373 = vld [vmem:[%s347 + $0xc8] sm:$0xff]
        %v374 = vld [vmem:[%s347 + $0xd0] sm:$0xff]
        %v375 = vld [vmem:[%s347 + $0xd8] sm:$0xff]
        %v376 = vld [vmem:[%s347 + $0xe0] sm:$0xff]
        %v377 = vld [vmem:[%s347 + $0xe8] sm:$0xff]
        %v378 = vld [vmem:[%s347 + $0xf0] sm:$0xff]
        %v379 = vld [vmem:[%s347 + $0xf8] sm:$0xff]
        %v380 = vld [vmem:[%s347 + $0x100] sm:$0xff]
        %v381 = vld [vmem:[%s347 + $0x108] sm:$0xff]
        %v382 = vld [vmem:[%s347 + $0x110] sm:$0xff]
        %v383 = vld [vmem:[%s347 + $0x118] sm:$0xff]
        %v384 = vld [vmem:[%s347 + $0x120] sm:$0xff]
        %v385 = vld [vmem:[%s347 + $0x128] sm:$0xff]
        %v386 = vld [vmem:[%s347 + $0x130] sm:$0xff]
        %v387 = vld [vmem:[%s347 + $0x138] sm:$0xff]
        %v388 = vld [vmem:[%s347 + $0x140] sm:$0xff]
        %v389 = vld [vmem:[%s347 + $0x148] sm:$0xff]
        %v390 = vld [vmem:[%s347 + $0x150] sm:$0xff]
        %v391 = vld [vmem:[%s347 + $0x158] sm:$0xff]
        %v392 = vld [vmem:[%s347 + $0x160] sm:$0xff]
        %v393 = vld [vmem:[%s347 + $0x168] sm:$0xff]
        %v394 = vld [vmem:[%s347 + $0x170] sm:$0xff]
        %v395 = vld [vmem:[%s347 + $0x178] sm:$0xff]
        %v396 = vld [vmem:[%s347 + $0x180] sm:$0xff]
        %v397 = vld [vmem:[%s347 + $0x188] sm:$0xff]
        %v398 = vld [vmem:[%s347 + $0x190] sm:$0xff]
        %v399 = vld [vmem:[%s347 + $0x198] sm:$0xff]
        %v400 = vld [vmem:[%s347 + $0x1a0] sm:$0xff]
        %v401 = vld [vmem:[%s347 + $0x1a8] sm:$0xff]
        %v402 = vld [vmem:[%s347 + $0x1b0] sm:$0xff]
        %v403 = vld [vmem:[%s347 + $0x1b8] sm:$0xff]
        %v404 = vld [vmem:[%s347 + $0x1c0] sm:$0xff]
        %v405 = vld [vmem:[%s347 + $0x1c8] sm:$0xff]
        %v406 = vld [vmem:[%s347 + $0x1d0] sm:$0xff]
        %v407 = vld [vmem:[%s347 + $0x1d8] sm:$0xff]
        %v408 = vld [vmem:[%s347 + $0x1e0] sm:$0xff]
        %v409 = vld [vmem:[%s347 + $0x1e8] sm:$0xff]
        %v410 = vld [vmem:[%s347 + $0x1f0] sm:$0xff]
        %v411 = vld [vmem:[%s347 + $0x1f8] sm:$0xff]
        %vm418 = vcmask 1046528
        %v419 = vrot.slane %v184, 1
        %v420 = vrot.slane %v186, 1
        %v421 = vsel %vm418, %v419, %v420
        %v422 = vrot.slane %v185, 1
        %v423 = vrot.slane %v187, 1
        %v424 = vsel %vm418, %v422, %v423
        %v425 = vrot.slane %v188, 1
        %v426 = vsel %vm418, %v420, %v425
        %v427 = vrot.slane %v189, 1
        %v428 = vsel %vm418, %v423, %v427
        %433 = vmatprep.subr.mxu0 %v379
        %434 = vmatpush1.msra.mxu0 %v378
        %435 = vmatprep.subr.mxu0 %v377
        %436 = vmatpush1.msra.mxu0 %v376
        %437 = vmatprep.subr.mxu0 %v375
        %438 = vmatpush1.msra.mxu0 %v374
        %439 = vmatprep.subr.mxu0 %v373
        %440 = vmatpush1.msra.mxu0 %v372
        %441 = vmatprep.subr.mxu0 %v371
        %442 = vmatpush1.msra.mxu0 %v370
        %443 = vmatprep.subr.mxu0 %v369
        %444 = vmatpush1.msra.mxu0 %v368
        %445 = vmatprep.subr.mxu0 %v367
        %446 = vmatpush1.msra.mxu0 %v366
        %447 = vmatprep.subr.mxu0 %v365
        %448 = vmatpush1.msra.mxu0 %v364
        %449 = vmatprep.subr.mxu0 %v363
        %450 = vmatpush1.msra.mxu0 %v362
        %451 = vmatprep.subr.mxu0 %v361
        %452 = vmatpush1.msra.mxu0 %v360
        %453 = vmatprep.subr.mxu0 %v359
        %454 = vmatpush1.msra.mxu0 %v358
        %455 = vmatprep.subr.mxu0 %v357
        %456 = vmatpush1.msra.mxu0 %v356
        %457 = vmatprep.subr.mxu0 %v355
        %458 = vmatpush1.msra.mxu0 %v354
        %459 = vmatprep.subr.mxu0 %v353
        %460 = vmatpush1.msra.mxu0 %v352
        %461 = vmatprep.subr.mxu0 %v351
        %462 = vmatpush1.msra.mxu0 %v350
        %463 = vmatprep.subr.mxu0 %v349
        %464 = vmatpush1.msra.mxu0 %v348
        %465 = vmatprep.subr.mxu0 %v411
        %466 = vmatpush2.msra.mxu0 %v410
        %467 = vmatprep.subr.mxu0 %v409
        %468 = vmatpush2.msra.mxu0 %v408
        %469 = vmatprep.subr.mxu0 %v407
        %470 = vmatpush2.msra.mxu0 %v406
        %471 = vmatprep.subr.mxu0 %v405
        %472 = vmatpush2.msra.mxu0 %v404
        %473 = vmatprep.subr.mxu0 %v403
        %474 = vmatpush2.msra.mxu0 %v402
        %475 = vmatprep.subr.mxu0 %v401
        %476 = vmatpush2.msra.mxu0 %v400
        %477 = vmatprep.subr.mxu0 %v399
        %478 = vmatpush2.msra.mxu0 %v398
        %479 = vmatprep.subr.mxu0 %v397
        %480 = vmatpush2.msra.mxu0 %v396
        %481 = vmatprep.subr.mxu0 %v395
        %482 = vmatpush2.msra.mxu0 %v394
        %483 = vmatprep.subr.mxu0 %v393
        %484 = vmatpush2.msra.mxu0 %v392
        %485 = vmatprep.subr.mxu0 %v391
        %486 = vmatpush2.msra.mxu0 %v390
        %487 = vmatprep.subr.mxu0 %v389
        %488 = vmatpush2.msra.mxu0 %v388
        %489 = vmatprep.subr.mxu0 %v387
        %490 = vmatpush2.msra.mxu0 %v386
        %491 = vmatprep.subr.mxu0 %v385
        %492 = vmatpush2.msra.mxu0 %v384
        %493 = vmatprep.subr.mxu0 %v383
        %494 = vmatpush2.msra.mxu0 %v382
        %495 = vmatprep.subr.mxu0 %v381
        %496 = vmatpush2.msra.mxu0 %v380
        %497 = vmatprep.mubr.f32.mxu0 %v424
        %498 = vmatmul.mubr.f32.gmra.mxu0 %v421
        %v499 = vpop.f32.mrf.mxu0
        %v500 = vadd.f32 0.0, %v499
        %v501 = vpop.f32.mrf.mxu0
        %v502 = vadd.f32 0.0, %v501
        %503 = vmatprep.mubr.f32.mxu0 %v428
        %504 = vmatmul.mubr.f32.gmra.mxu0 %v426
        %v505 = vpop.f32.mrf.mxu0
        %v506 = vadd.f32 0.0, %v505
        %v507 = vpop.f32.mrf.mxu0
        %v508 = vadd.f32 0.0, %v507
        %509 = vdwg.mxu0
        %v510 = vadd.f32 %v343, %v500
        %v511 = vadd.f32 %v344, %v502
        %v512 = vadd.f32 %v345, %v506
        %v513 = vadd.f32 %v346, %v508
        %s514 = scalar_lea.vmem [#allocation2], 1024
        %v515 = vld [vmem:[%s514] sm:$0xff]
        %v516 = vld [vmem:[%s514 + $0x8] sm:$0xff]
        %v517 = vld [vmem:[%s514 + $0x10] sm:$0xff]
        %v518 = vld [vmem:[%s514 + $0x18] sm:$0xff]
        %v519 = vld [vmem:[%s514 + $0x20] sm:$0xff]
        %v520 = vld [vmem:[%s514 + $0x28] sm:$0xff]
        %v521 = vld [vmem:[%s514 + $0x30] sm:$0xff]
        %v522 = vld [vmem:[%s514 + $0x38] sm:$0xff]
        %v523 = vld [vmem:[%s514 + $0x40] sm:$0xff]
        %v524 = vld [vmem:[%s514 + $0x48] sm:$0xff]
        %v525 = vld [vmem:[%s514 + $0x50] sm:$0xff]
        %v526 = vld [vmem:[%s514 + $0x58] sm:$0xff]
        %v527 = vld [vmem:[%s514 + $0x60] sm:$0xff]
        %v528 = vld [vmem:[%s514 + $0x68] sm:$0xff]
        %v529 = vld [vmem:[%s514 + $0x70] sm:$0xff]
        %v530 = vld [vmem:[%s514 + $0x78] sm:$0xff]
        %v531 = vld [vmem:[%s514 + $0x80] sm:$0xff]
        %v532 = vld [vmem:[%s514 + $0x88] sm:$0xff]
        %v533 = vld [vmem:[%s514 + $0x90] sm:$0xff]
        %v534 = vld [vmem:[%s514 + $0x98] sm:$0xff]
        %v535 = vld [vmem:[%s514 + $0xa0] sm:$0xff]
        %v536 = vld [vmem:[%s514 + $0xa8] sm:$0xff]
        %v537 = vld [vmem:[%s514 + $0xb0] sm:$0xff]
        %v538 = vld [vmem:[%s514 + $0xb8] sm:$0xff]
        %v539 = vld [vmem:[%s514 + $0xc0] sm:$0xff]
        %v540 = vld [vmem:[%s514 + $0xc8] sm:$0xff]
        %v541 = vld [vmem:[%s514 + $0xd0] sm:$0xff]
        %v542 = vld [vmem:[%s514 + $0xd8] sm:$0xff]
        %v543 = vld [vmem:[%s514 + $0xe0] sm:$0xff]
        %v544 = vld [vmem:[%s514 + $0xe8] sm:$0xff]
        %v545 = vld [vmem:[%s514 + $0xf0] sm:$0xff]
        %v546 = vld [vmem:[%s514 + $0xf8] sm:$0xff]
        %v547 = vld [vmem:[%s514 + $0x100] sm:$0xff]
        %v548 = vld [vmem:[%s514 + $0x108] sm:$0xff]
        %v549 = vld [vmem:[%s514 + $0x110] sm:$0xff]
        %v550 = vld [vmem:[%s514 + $0x118] sm:$0xff]
        %v551 = vld [vmem:[%s514 + $0x120] sm:$0xff]
        %v552 = vld [vmem:[%s514 + $0x128] sm:$0xff]
        %v553 = vld [vmem:[%s514 + $0x130] sm:$0xff]
        %v554 = vld [vmem:[%s514 + $0x138] sm:$0xff]
        %v555 = vld [vmem:[%s514 + $0x140] sm:$0xff]
        %v556 = vld [vmem:[%s514 + $0x148] sm:$0xff]
        %v557 = vld [vmem:[%s514 + $0x150] sm:$0xff]
        %v558 = vld [vmem:[%s514 + $0x158] sm:$0xff]
        %v559 = vld [vmem:[%s514 + $0x160] sm:$0xff]
        %v560 = vld [vmem:[%s514 + $0x168] sm:$0xff]
        %v561 = vld [vmem:[%s514 + $0x170] sm:$0xff]
        %v562 = vld [vmem:[%s514 + $0x178] sm:$0xff]
        %v563 = vld [vmem:[%s514 + $0x180] sm:$0xff]
        %v564 = vld [vmem:[%s514 + $0x188] sm:$0xff]
        %v565 = vld [vmem:[%s514 + $0x190] sm:$0xff]
        %v566 = vld [vmem:[%s514 + $0x198] sm:$0xff]
        %v567 = vld [vmem:[%s514 + $0x1a0] sm:$0xff]
        %v568 = vld [vmem:[%s514 + $0x1a8] sm:$0xff]
        %v569 = vld [vmem:[%s514 + $0x1b0] sm:$0xff]
        %v570 = vld [vmem:[%s514 + $0x1b8] sm:$0xff]
        %v571 = vld [vmem:[%s514 + $0x1c0] sm:$0xff]
        %v572 = vld [vmem:[%s514 + $0x1c8] sm:$0xff]
        %v573 = vld [vmem:[%s514 + $0x1d0] sm:$0xff]
        %v574 = vld [vmem:[%s514 + $0x1d8] sm:$0xff]
        %v575 = vld [vmem:[%s514 + $0x1e0] sm:$0xff]
        %v576 = vld [vmem:[%s514 + $0x1e8] sm:$0xff]
        %v577 = vld [vmem:[%s514 + $0x1f0] sm:$0xff]
        %v578 = vld [vmem:[%s514 + $0x1f8] sm:$0xff]
        %vm579 = vcmask 1045504
        %v580 = vrot.slane %v184, 2
        %v581 = vrot.slane %v186, 2
        %v582 = vsel %vm579, %v580, %v581
        %v583 = vrot.slane %v185, 2
        %v584 = vrot.slane %v187, 2
        %v585 = vsel %vm579, %v583, %v584
        %v586 = vrot.slane %v188, 2
        %v587 = vsel %vm579, %v581, %v586
        %v588 = vrot.slane %v189, 2
        %v589 = vsel %vm579, %v584, %v588
        %594 = vmatprep.subr.mxu0 %v546
        %595 = vmatpush1.msra.mxu0 %v545
        %596 = vmatprep.subr.mxu0 %v544
        %597 = vmatpush1.msra.mxu0 %v543
        %598 = vmatprep.subr.mxu0 %v542
        %599 = vmatpush1.msra.mxu0 %v541
        %600 = vmatprep.subr.mxu0 %v540
        %601 = vmatpush1.msra.mxu0 %v539
        %602 = vmatprep.subr.mxu0 %v538
        %603 = vmatpush1.msra.mxu0 %v537
        %604 = vmatprep.subr.mxu0 %v536
        %605 = vmatpush1.msra.mxu0 %v535
        %606 = vmatprep.subr.mxu0 %v534
        %607 = vmatpush1.msra.mxu0 %v533
        %608 = vmatprep.subr.mxu0 %v532
        %609 = vmatpush1.msra.mxu0 %v531
        %610 = vmatprep.subr.mxu0 %v530
        %611 = vmatpush1.msra.mxu0 %v529
        %612 = vmatprep.subr.mxu0 %v528
        %613 = vmatpush1.msra.mxu0 %v527
        %614 = vmatprep.subr.mxu0 %v526
        %615 = vmatpush1.msra.mxu0 %v525
        %616 = vmatprep.subr.mxu0 %v524
        %617 = vmatpush1.msra.mxu0 %v523
        %618 = vmatprep.subr.mxu0 %v522
        %619 = vmatpush1.msra.mxu0 %v521
        %620 = vmatprep.subr.mxu0 %v520
        %621 = vmatpush1.msra.mxu0 %v519
        %622 = vmatprep.subr.mxu0 %v518
        %623 = vmatpush1.msra.mxu0 %v517
        %624 = vmatprep.subr.mxu0 %v516
        %625 = vmatpush1.msra.mxu0 %v515
        %626 = vmatprep.subr.mxu0 %v578
        %627 = vmatpush2.msra.mxu0 %v577
        %628 = vmatprep.subr.mxu0 %v576
        %629 = vmatpush2.msra.mxu0 %v575
        %630 = vmatprep.subr.mxu0 %v574
        %631 = vmatpush2.msra.mxu0 %v573
        %632 = vmatprep.subr.mxu0 %v572
        %633 = vmatpush2.msra.mxu0 %v571
        %634 = vmatprep.subr.mxu0 %v570
        %635 = vmatpush2.msra.mxu0 %v569
        %636 = vmatprep.subr.mxu0 %v568
        %637 = vmatpush2.msra.mxu0 %v567
        %638 = vmatprep.subr.mxu0 %v566
        %639 = vmatpush2.msra.mxu0 %v565
        %640 = vmatprep.subr.mxu0 %v564
        %641 = vmatpush2.msra.mxu0 %v563
        %642 = vmatprep.subr.mxu0 %v562
        %643 = vmatpush2.msra.mxu0 %v561
        %644 = vmatprep.subr.mxu0 %v560
        %645 = vmatpush2.msra.mxu0 %v559
        %646 = vmatprep.subr.mxu0 %v558
        %647 = vmatpush2.msra.mxu0 %v557
        %648 = vmatprep.subr.mxu0 %v556
        %649 = vmatpush2.msra.mxu0 %v555
        %650 = vmatprep.subr.mxu0 %v554
        %651 = vmatpush2.msra.mxu0 %v553
        %652 = vmatprep.subr.mxu0 %v552
        %653 = vmatpush2.msra.mxu0 %v551
        %654 = vmatprep.subr.mxu0 %v550
        %655 = vmatpush2.msra.mxu0 %v549
        %656 = vmatprep.subr.mxu0 %v548
        %657 = vmatpush2.msra.mxu0 %v547
        %658 = vmatprep.mubr.f32.mxu0 %v585
        %659 = vmatmul.mubr.f32.gmra.mxu0 %v582
        %v660 = vpop.f32.mrf.mxu0
        %v661 = vadd.f32 0.0, %v660
        %v662 = vpop.f32.mrf.mxu0
        %v663 = vadd.f32 0.0, %v662
        %664 = vmatprep.mubr.f32.mxu0 %v589
        %665 = vmatmul.mubr.f32.gmra.mxu0 %v587
        %v666 = vpop.f32.mrf.mxu0
        %v667 = vadd.f32 0.0, %v666
        %v668 = vpop.f32.mrf.mxu0
        %v669 = vadd.f32 0.0, %v668
        %670 = vdwg.mxu0
        %v671 = vadd.f32 %v510, %v661
        %v672 = vadd.f32 %v511, %v663
        %v673 = vadd.f32 %v512, %v667
        %v674 = vadd.f32 %v513, %v669
        %v675 = vxor.u32 %v671, 2147483648
        %v676 = vxor.u32 %v672, 2147483648
        %v677 = vxor.u32 %v673, 2147483648
        %v678 = vxor.u32 %v674, 2147483648
        %v679 = vmul.f32 %v675, 1.442695
        %v680 = vpow.pop %v679
        %v681 = vmul.f32 %v676, 1.442695
        %v682 = vpow.pop %v681
        %v683 = vmul.f32 %v677, 1.442695
        %v684 = vpow.pop %v683
        %v685 = vmul.f32 %v678, 1.442695
        %v686 = vpow.pop %v685
        %v687 = vadd.f32 %v680, 1.0
        %v688 = vadd.f32 %v682, 1.0
        %v689 = vadd.f32 %v684, 1.0
        %v690 = vadd.f32 %v686, 1.0
        %v691 = vrcp.pop %v687
        %v692 = vmul.f32 1.0, %v691
        %v693 = vrcp.pop %v688
        %v694 = vmul.f32 1.0, %v693
        %v695 = vrcp.pop %v689
        %v696 = vmul.f32 1.0, %v695
        %v697 = vrcp.pop %v690
        %v698 = vmul.f32 1.0, %v697
        %vm703 = vcmask 1040384
        %v704 = vrot.slane %v692, 7
        %v705 = vrot.slane %v694, 7
        %v706 = vrot.slane %v696, 7
        %v707 = vsel %vm703, %v704, %v706
        %v708 = vrot.slane %v698, 7
        %v709 = vsel %vm703, %v705, %v708
        %v716 = vmul.f32 %v184, %v704
        %v717 = vmul.f32 %v185, %v705
        %v718 = vmul.f32 %v186, %v707
        %v719 = vmul.f32 %v187, %v709
        %v720 = vmul.f32 %v188, %v706
        %v721 = vmul.f32 %v189, %v708
        %v728 = vrot.slane %v716, 1
        %v729 = vrot.slane %v718, 1
        %v730 = vsel %vm418, %v728, %v729
        %v731 = vrot.slane %v717, 1
        %v732 = vrot.slane %v719, 1
        %v733 = vsel %vm418, %v731, %v732
        %v734 = vrot.slane %v720, 1
        %v735 = vsel %vm418, %v729, %v734
        %v736 = vrot.slane %v721, 1
        %v737 = vsel %vm418, %v732, %v736
        %742 = vst [vmem:[%s178] sm:$0xff] %v730
        %743 = vst [vmem:[%s178 + $0x8] sm:$0xff] %v733
        %744 = vst [vmem:[%s178 + $0x10] sm:$0xff] %v735
        %745 = vst [vmem:[%s178 + $0x18] sm:$0xff] %v737
        %s746 = sand.u32 %s94, 1
        %s747 = scalar_lea.sflag [#allocation4], %s746
        %s748 = sand.u32 %s94, 1
        %s749 = smul.addr %s748, 32
        %s750 = scalar_lea.vmem [#allocation5], %s749
        // Predicated region
        $region37: #{tpu_custom_call.1} parent=31 // pred_check
          %p751 = pneg %p104
        $region38: #{tpu_custom_call.1} parent=31 // pred_check_branch
          %753 = sbr.rel (%p751) target = $region40
        $region39: #{tpu_custom_call.1} parent=31 // pred_region
          %s755 = ssub.s32 512, 512
          %756 = vsyncadd %s747, %s755
          %s757 = smul.addr %s18, 4
          %s758 = smul.addr %s757, 128
          %s759 = scalar_lea.hbm %s3, %s758
          %s760 = sshll.u32 %s750, 4
          %s761 = int_to_ptr.vmem [resolvable:$true] %s760
          %766 = dma.vmem_to_hbm [thread:$0]  %s761, 512, %s759, %s747, 256, 256, 16
        $region40: #{tpu_custom_call.1} parent=31 // pred_fallthru
          _
      $region32: #{tpu_custom_call.1} parent=5 // pred_fallthru
        _
      %p767 = scmp.le.s32.totalorder 2, %s13
      // Predicated region
      $region41: #{tpu_custom_call.1} parent=5 // pred_check
        %p768 = pneg %p767
      $region42: #{tpu_custom_call.1} parent=5 // pred_check_branch
        %770 = sbr.rel (%p768) target = $region44
      $region43: #{tpu_custom_call.1} parent=5 // pred_region
        %s771 = ssub.s32 %s13, 2
        // Predicated region
        $region45: #{tpu_custom_call.1} parent=43 // pred_check
          %p772 = pneg %p110
        $region46: #{tpu_custom_call.1} parent=43 // pred_check_branch
          %774 = sbr.rel (%p772) target = $region48
        $region47: #{tpu_custom_call.1} parent=43 // pred_region
          %s775 = sand.u32 %s95, 1
          %s776 = scalar_lea.sflag [#allocation4], %s775
          %s777 = sand.u32 %s95, 1
          %s778 = smul.addr %s777, 32
          %s779 = scalar_lea.vmem [#allocation5], %s778
          %780 = dma.done %s776, 512
        $region48: #{tpu_custom_call.1} parent=43 // pred_fallthru
          _
      $region44: #{tpu_custom_call.1} parent=5 // pred_fallthru
        _
    $region6: #{tpu_custom_call.1} parent=1 // loop_footer
      %s17 = sadd.s32 1, %s13
    $region7: #{tpu_custom_call.1} parent=1 // loop_footer_branch
      %12 = sbr.rel target = $region3
    $region8: #{tpu_custom_call.1} parent=1 // loop_exit
      _
    %781 = vsyncpa [#allocation3], 1
    %s782 = scalar_lea.sflag [#allocation3], 1
    %783 = vsyncpa %s782, 1
    %784 = vsyncpa [#allocation4], 1
    %s785 = scalar_lea.sflag [#allocation4], 1
    %786 = vsyncpa %s785, 1

</llo_original>
